<compile_context>
chip_gen: v7x
topology: tpu7x:2x2x1
jax: 0.10.0
libtpu: 0.0.40
codegen_flags: <defaults>
</compile_context>

<pallas_src>
import functools

import jax
import jax.numpy as jnp
from jax import lax
from jax.experimental import pallas as pl
from jax.experimental.pallas import tpu as pltpu


def _round_up(n, m):
    return ((n + m - 1) // m) * m


def _tv_kernel(x_ref, row_ref, o_ref, *, W, n_planes, blocks_per_shard,
               h_scale, w_scale):
    s = pl.program_id(0)
    i = pl.program_id(1)
    P, L = x_ref.shape

    @pl.when(i == 0)
    def _():
        o_ref[...] = jnp.zeros_like(o_ref)

    # Lane-only neighbour-validity masks, built once per step on (1, L) rows
    # (negligible XLU/VPU work) from the image-row map rolled with the same
    # primitive as the data, so they stay correct regardless of the rotation
    # direction.  Scales are folded in so the epilogue is one (1, L) FMA.
    r = row_ref[...]                                   # (1, L) image-row index
    r_h = pltpu.roll(r, L - W, axis=1)
    r_w = pltpu.roll(r, L - 1, axis=1)
    # Vertical neighbour: rolled partner sits exactly one image row away.
    mh = (jnp.abs(r_h - r) == 1).astype(jnp.float32) * h_scale   # (1, L)
    # Horizontal neighbour: rolled partner sits in the same image row.
    mw = (r_w == r).astype(jnp.float32) * w_scale                # (1, L)

    def contrib(x):
        dh = pltpu.roll(x, L - W, axis=1) - x          # (P, L)
        dw = pltpu.roll(x, L - 1, axis=1) - x          # (P, L)
        h_row = jnp.sum(dh * dh, axis=0, keepdims=True)   # (1, L)
        w_row = jnp.sum(dw * dw, axis=0, keepdims=True)   # (1, L)
        return (h_row * mh + w_row * mw).reshape(1, 1, L)

    xf = x_ref[...].astype(jnp.float32)
    # Number of real planes left for this logical block (may be <= 0 on dummy
    # grid steps of an uneven shard; the index_map clamps the DMA in-bounds).
    valid = n_planes - (s * blocks_per_shard + i) * P

    @pl.when(valid >= P)                               # hot path: full blocks
    def _():
        o_ref[...] += contrib(xf)

    @pl.when(valid < P)                                # cold path: ragged tail
    def _():
        keep = lax.broadcasted_iota(jnp.int32, (P, 1), 0) < valid
        o_ref[...] += contrib(jnp.where(keep, xf, 0.0))


def tv_loss(x, tv_loss_weight: float = 1.0, *, block_bytes: int = 4 * 1024 * 1024):
    """Pallas TPU implementation of TVLoss.forward for NCHW input x."""
    B, C, H, W = x.shape
    N = B * C
    L = H * W

    count_h = C * (H - 1) * W
    count_w = C * H * (W - 1)
    scale = 2.0 * float(tv_loss_weight) / float(B)
    # Degenerate H==1 / W==1: the PyTorch module divides by zero (0/0 -> nan);
    # mirror that with a nan scale instead of raising ZeroDivisionError.
    h_scale = scale / float(count_h) if count_h else float("nan")
    w_scale = scale / float(count_w) if count_w else float("nan")
    if H == 2:
        # The direction-agnostic vertical mask counts every vertical pair
        # exactly twice when H == 2 (the +W and -W neighbours coincide).
        h_scale *= 0.5

    itemsize = jnp.dtype(x.dtype).itemsize
    # Packed-tile sublane multiple per dtype (f32:8, bf16:16, int8/fp8:32).
    sub = {4: 8, 2: 16, 1: 32}.get(itemsize, 8)

    # Planes per block: budget block_bytes in f32-expanded terms so the
    # in-kernel f32 temporaries stay well inside the VMEM limit.
    planes_per_block = max(block_bytes // (L * 4), 1)
    P = max((planes_per_block // sub) * sub, sub)
    P = int(min(P, _round_up(N, sub)))
    # TODO(synk): for very large single planes (8 * L * 4 >> VMEM budget) also
    # tile within a plane along L with a W-element halo for the h-diffs.

    num_blocks = -(-N // P)
    # Megacore (v7x): shard blocks across a leading "parallel" axis with
    # per-shard partial outputs; a harmless no-op on single-core v5e/v6e.
    # TODO(synk): derive num_shards from pltpu.get_tpu_info() core count.
    num_shards = 2 if num_blocks >= 2 else 1
    blocks_per_shard = -(-num_blocks // num_shards)
    last_block = num_blocks - 1

    xr = x.reshape(N, L)                         # free: contiguous collapse
    col = jnp.arange(L, dtype=jnp.int32)
    row = (col // W).reshape(1, L)               # image-row index per lane

    kernel = functools.partial(
        _tv_kernel, W=W, n_planes=N, blocks_per_shard=blocks_per_shard,
        h_scale=h_scale, w_scale=w_scale)

    cost = pl.CostEstimate(
        flops=int(7 * N * L),
        transcendentals=0,
        bytes_accessed=int(N * L * itemsize + L * 4 + num_shards * L * 4),
    )

    out = pl.pallas_call(
        kernel,
        out_shape=jax.ShapeDtypeStruct((num_shards, 1, L), jnp.float32),
        grid=(num_shards, blocks_per_shard),
        in_specs=[
            # Clamp so dummy steps of an uneven shard never DMA past the end;
            # their contribution is zeroed in-kernel (valid <= 0).
            pl.BlockSpec((P, L),
                         lambda s, i: (jnp.minimum(s * blocks_per_shard + i,
                                                   last_block), 0)),
            pl.BlockSpec((1, L), lambda s, i: (0, 0)),
        ],
        out_specs=pl.BlockSpec((1, 1, L), lambda s, i: (s, 0, 0)),
        compiler_params=pltpu.CompilerParams(
            dimension_semantics=("parallel", "arbitrary"),
            vmem_limit_bytes=48 * 1024 * 1024,
        ),
        cost_estimate=cost,
    )(xr, row)

    # Tiny deferred reduction over the lane-dense per-shard partial sums.
    return jnp.sum(out)


def _tv_loss_ref(x, tv_loss_weight: float = 1.0):
    """Pure-JAX reference mirroring the PyTorch module exactly."""
    B, C, H, W = x.shape
    count_h = C * (H - 1) * W
    count_w = C * H * (W - 1)
    xf = x.astype(jnp.float32)
    h_tv = jnp.sum((xf[:, :, 1:, :] - xf[:, :, : H - 1, :]) ** 2)
    w_tv = jnp.sum((xf[:, :, :, 1:] - xf[:, :, :, : W - 1]) ** 2)
    return tv_loss_weight * 2.0 * (h_tv / count_h + w_tv / count_w) / B


if __name__ == "__main__":
    root = jax.random.PRNGKey(0)
    k1, k2, k3, k4, k5 = jax.random.split(root, 5)

    # Primary shape (NCHW).
    x1 = jax.random.normal(k1, (2, 4, 16, 16), dtype=jnp.float32)
    out1 = jax.block_until_ready(tv_loss(x1, tv_loss_weight=1.0))
    ref1 = _tv_loss_ref(x1, tv_loss_weight=1.0)
    assert jnp.allclose(out1, ref1, rtol=1e-5, atol=1e-5), (out1, ref1)

    # Ragged tail: N = 15 planes vs P = 16 -> in-kernel plane-mask path
    # (no wrapper-side pad copy).
    x2 = jax.random.normal(k2, (3, 5, 8, 16), dtype=jnp.float32)
    out2 = jax.block_until_ready(tv_loss(x2, tv_loss_weight=0.5))
    ref2 = _tv_loss_ref(x2, tv_loss_weight=0.5)
    assert jnp.allclose(out2, ref2, rtol=1e-5, atol=1e-5), (out2, ref2)

    # Multi-block, two-shard "parallel" axis with an odd block count
    # (exercises the clamped dummy grid step on shard 1).
    x3 = jax.random.normal(k3, (3, 8, 16, 16), dtype=jnp.float32)
    out3 = jax.block_until_ready(tv_loss(x3, tv_loss_weight=1.0, block_bytes=8 * 1024))
    ref3 = _tv_loss_ref(x3, tv_loss_weight=1.0)
    assert jnp.allclose(out3, ref3, rtol=1e-5, atol=1e-5), (out3, ref3)

    # bf16 input: exercises the 16-sublane packed-tile multiple + ragged mask.
    x4 = jax.random.normal(k4, (2, 3, 8, 16), dtype=jnp.float32).astype(jnp.bfloat16)
    out4 = jax.block_until_ready(tv_loss(x4, tv_loss_weight=1.0))
    ref4 = _tv_loss_ref(x4, tv_loss_weight=1.0)
    assert jnp.allclose(out4, ref4, rtol=1e-4, atol=1e-4), (out4, ref4)

    # H == 2: exercises the double-count-compensated vertical mask.
    x5 = jax.random.normal(k5, (2, 4, 2, 128), dtype=jnp.float32)
    out5 = jax.block_until_ready(tv_loss(x5, tv_loss_weight=0.7))
    ref5 = _tv_loss_ref(x5, tv_loss_weight=0.7)
    assert jnp.allclose(out5, ref5, rtol=1e-5, atol=1e-5), (out5, ref5)

    print("KERNEL_OK")
</pallas_src>

<mosaic_0001>
module attributes {stable_mosaic.version = 11 : i64} {
  func.func @_tv_kernel(%arg0: i32, %arg1: i32, %arg2: memref<8x256xf32, #tpu.memory_space<vmem>>, %arg3: memref<1x256xi32, #tpu.memory_space<vmem>>, %arg4: memref<1x1x256xf32, #tpu.memory_space<vmem>>) attributes {dimension_semantics = [#tpu.dimension_semantics<parallel>, #tpu.dimension_semantics<arbitrary>], iteration_bounds = array<i64: 1, 1>, scalar_prefetch = 0 : i64, scratch_operands = 0 : i64, tpu.core_type = #tpu.core_type<tc>, window_params = [{transform_indices = @transform_0, window_bounds = array<i64: 8, 256>}, {pipeline_mode = #tpu.pipeline_mode<synchronous>, transform_indices = @transform_1, window_bounds = array<i64: 1, 256>}, {transform_indices = @transform_2, window_bounds = array<i64: 1, 1, 256>}]} {
    %c0_i32 = arith.constant 0 : i32
    %0 = arith.cmpi eq, %arg1, %c0_i32 : i32
    %1 = arith.extui %0 : i1 to i32
    %c0_i32_0 = arith.constant 0 : i32
    %2 = arith.cmpi ne, %1, %c0_i32_0 : i32
    scf.if %2 {
      %cst_11 = arith.constant 0.000000e+00 : f32
      %30 = vector.broadcast %cst_11 : f32 to vector<1x1x256xf32>
      %c0_12 = arith.constant 0 : index
      %c0_13 = arith.constant 0 : index
      %c0_14 = arith.constant 0 : index
      %31 = vector.load %arg4[%c0_12, %c0_13, %c0_14] : memref<1x1x256xf32, #tpu.memory_space<vmem>>, vector<1x1x256xf32>
      tpu.vector_store %arg4[%c0_12, %c0_13, %c0_14], %30 {strides = array<i32>} : memref<1x1x256xf32, #tpu.memory_space<vmem>>, vector<1x1x256xf32>,
    } else {
    }
    %c0 = arith.constant 0 : index
    %c0_1 = arith.constant 0 : index
    %3 = vector.load %arg3[%c0, %c0_1] : memref<1x256xi32, #tpu.memory_space<vmem>>, vector<1x256xi32>
    %c240_i32 = arith.constant 240 : i32
    %4 = tpu.dynamic_rotate %3 by %c240_i32 dim 1 : vector<1x256xi32>, i32 -> vector<1x256xi32>
    %c255_i32 = arith.constant 255 : i32
    %5 = tpu.dynamic_rotate %3 by %c255_i32 dim 1 : vector<1x256xi32>, i32 -> vector<1x256xi32>
    %6 = arith.subi %4, %3 : vector<1x256xi32>
    %7 = math.absi %6 : vector<1x256xi32>
    %c1_i32 = arith.constant 1 : i32
    %8 = vector.broadcast %c1_i32 : i32 to vector<1x256xi32>
    %9 = arith.cmpi eq, %7, %8 : vector<1x256xi32>
    %10 = arith.extui %9 : vector<1x256xi1> to vector<1x256xi32>
    %11 = arith.sitofp %10 : vector<1x256xi32> to vector<1x256xf32>
    %cst = arith.constant 0.00104166672 : f32
    %12 = vector.broadcast %cst : f32 to vector<1x256xf32>
    %13 = arith.mulf %11, %12 : vector<1x256xf32>
    %14 = arith.cmpi eq, %5, %3 : vector<1x256xi32>
    %15 = arith.extui %14 : vector<1x256xi1> to vector<1x256xi32>
    %16 = arith.sitofp %15 : vector<1x256xi32> to vector<1x256xf32>
    %cst_2 = arith.constant 0.00104166672 : f32
    %17 = vector.broadcast %cst_2 : f32 to vector<1x256xf32>
    %18 = arith.mulf %16, %17 : vector<1x256xf32>
    %c0_3 = arith.constant 0 : index
    %c0_4 = arith.constant 0 : index
    %19 = vector.load %arg2[%c0_3, %c0_4] : memref<8x256xf32, #tpu.memory_space<vmem>>, vector<8x256xf32>
    %c1_i32_5 = arith.constant 1 : i32
    %20 = arith.muli %arg0, %c1_i32_5 : i32
    %21 = arith.addi %20, %arg1 : i32
    %c8_i32 = arith.constant 8 : i32
    %22 = arith.muli %21, %c8_i32 : i32
    %c8_i32_6 = arith.constant 8 : i32
    %23 = arith.subi %c8_i32_6, %22 : i32
    %c8_i32_7 = arith.constant 8 : i32
    %24 = arith.cmpi sge, %23, %c8_i32_7 : i32
    %25 = arith.extui %24 : i1 to i32
    %c0_i32_8 = arith.constant 0 : i32
    %26 = arith.cmpi ne, %25, %c0_i32_8 : i32
    scf.if %26 {
      %c0_11 = arith.constant 0 : index
      %c0_12 = arith.constant 0 : index
      %c0_13 = arith.constant 0 : index
      %30 = vector.load %arg4[%c0_11, %c0_12, %c0_13] : memref<1x1x256xf32, #tpu.memory_space<vmem>>, vector<1x1x256xf32>
      %c240_i32_14 = arith.constant 240 : i32
      %31 = tpu.dynamic_rotate %19 by %c240_i32_14 dim 1 : vector<8x256xf32>, i32 -> vector<8x256xf32>
      %32 = arith.subf %31, %19 : vector<8x256xf32>
      %c255_i32_15 = arith.constant 255 : i32
      %33 = tpu.dynamic_rotate %19 by %c255_i32_15 dim 1 : vector<8x256xf32>, i32 -> vector<8x256xf32>
      %34 = arith.subf %33, %19 : vector<8x256xf32>
      %35 = arith.mulf %32, %32 : vector<8x256xf32>
      %cst_16 = arith.constant dense<0.000000e+00> : vector<256xf32>
      %36 = vector.multi_reduction <add>, %35, %cst_16 [0] : vector<8x256xf32> to vector<256xf32>
      %37 = vector.shape_cast %36 : vector<256xf32> to vector<1x256xf32>
      %38 = arith.mulf %34, %34 : vector<8x256xf32>
      %cst_17 = arith.constant dense<0.000000e+00> : vector<256xf32>
      %39 = vector.multi_reduction <add>, %38, %cst_17 [0] : vector<8x256xf32> to vector<256xf32>
      %40 = vector.shape_cast %39 : vector<256xf32> to vector<1x256xf32>
      %41 = arith.mulf %37, %13 : vector<1x256xf32>
      %42 = arith.mulf %40, %18 : vector<1x256xf32>
      %43 = arith.addf %41, %42 : vector<1x256xf32>
      %44 = vector.shape_cast %43 : vector<1x256xf32> to vector<1x1x256xf32>
      %45 = arith.addf %30, %44 : vector<1x1x256xf32>
      %c0_18 = arith.constant 0 : index
      %c0_19 = arith.constant 0 : index
      %c0_20 = arith.constant 0 : index
      %46 = vector.load %arg4[%c0_18, %c0_19, %c0_20] : memref<1x1x256xf32, #tpu.memory_space<vmem>>, vector<1x1x256xf32>
      tpu.vector_store %arg4[%c0_18, %c0_19, %c0_20], %45 {strides = array<i32>} : memref<1x1x256xf32, #tpu.memory_space<vmem>>, vector<1x1x256xf32>,
    } else {
    }
    %c8_i32_9 = arith.constant 8 : i32
    %27 = arith.cmpi slt, %23, %c8_i32_9 : i32
    %28 = arith.extui %27 : i1 to i32
    %c0_i32_10 = arith.constant 0 : i32
    %29 = arith.cmpi ne, %28, %c0_i32_10 : i32
    scf.if %29 {
      %30 = tpu.iota {dimensions = array<i32: 0>} : vector<8x1xi32>
      %31 = vector.broadcast %23 : i32 to vector<8x1xi32>
      %32 = arith.cmpi slt, %30, %31 : vector<8x1xi32>
      %c0_11 = arith.constant 0 : index
      %c0_12 = arith.constant 0 : index
      %c0_13 = arith.constant 0 : index
      %33 = vector.load %arg4[%c0_11, %c0_12, %c0_13] : memref<1x1x256xf32, #tpu.memory_space<vmem>>, vector<1x1x256xf32>
      %cst_14 = arith.constant 0.000000e+00 : f32
      %34 = vector.shape_cast %32 : vector<8x1xi1> to vector<8x1xi1>
      %35 = vector.broadcast %34 : vector<8x1xi1> to vector<8x256xi1>
      %36 = vector.broadcast %cst_14 : f32 to vector<8x256xf32>
      %37 = arith.select %35, %19, %36 : vector<8x256xi1>, vector<8x256xf32>
      %c240_i32_15 = arith.constant 240 : i32
      %38 = tpu.dynamic_rotate %37 by %c240_i32_15 dim 1 : vector<8x256xf32>, i32 -> vector<8x256xf32>
      %39 = arith.subf %38, %37 : vector<8x256xf32>
      %c255_i32_16 = arith.constant 255 : i32
      %40 = tpu.dynamic_rotate %37 by %c255_i32_16 dim 1 : vector<8x256xf32>, i32 -> vector<8x256xf32>
      %41 = arith.subf %40, %37 : vector<8x256xf32>
      %42 = arith.mulf %39, %39 : vector<8x256xf32>
      %cst_17 = arith.constant dense<0.000000e+00> : vector<256xf32>
      %43 = vector.multi_reduction <add>, %42, %cst_17 [0] : vector<8x256xf32> to vector<256xf32>
      %44 = vector.shape_cast %43 : vector<256xf32> to vector<1x256xf32>
      %45 = arith.mulf %41, %41 : vector<8x256xf32>
      %cst_18 = arith.constant dense<0.000000e+00> : vector<256xf32>
      %46 = vector.multi_reduction <add>, %45, %cst_18 [0] : vector<8x256xf32> to vector<256xf32>
      %47 = vector.shape_cast %46 : vector<256xf32> to vector<1x256xf32>
      %48 = arith.mulf %44, %13 : vector<1x256xf32>
      %49 = arith.mulf %47, %18 : vector<1x256xf32>
      %50 = arith.addf %48, %49 : vector<1x256xf32>
      %51 = vector.shape_cast %50 : vector<1x256xf32> to vector<1x1x256xf32>
      %52 = arith.addf %33, %51 : vector<1x1x256xf32>
      %c0_19 = arith.constant 0 : index
      %c0_20 = arith.constant 0 : index
      %c0_21 = arith.constant 0 : index
      %53 = vector.load %arg4[%c0_19, %c0_20, %c0_21] : memref<1x1x256xf32, #tpu.memory_space<vmem>>, vector<1x1x256xf32>
      tpu.vector_store %arg4[%c0_19, %c0_20, %c0_21], %52 {strides = array<i32>} : memref<1x1x256xf32, #tpu.memory_space<vmem>>, vector<1x1x256xf32>,
    } else {
    }
    return
  }
  func.func @transform_0(%arg0: i32, %arg1: i32) -> (i32, i32) {
    %c1_i32 = arith.constant 1 : i32
    %0 = arith.muli %arg0, %c1_i32 : i32
    %1 = arith.addi %0, %arg1 : i32
    %c0_i32 = arith.constant 0 : i32
    %2 = arith.minsi %1, %c0_i32 : i32
    %c0_i32_0 = arith.constant 0 : i32
    %c0_i32_1 = arith.constant 0 : i32
    return %2, %c0_i32_0 : i32, i32
  }
  func.func @transform_1(%arg0: i32, %arg1: i32) -> (i32, i32) {
    %c0_i32 = arith.constant 0 : i32
    %c0_i32_0 = arith.constant 0 : i32
    %c0_i32_1 = arith.constant 0 : i32
    return %c0_i32, %c0_i32_0 : i32, i32
  }
  func.func @transform_2(%arg0: i32, %arg1: i32) -> (i32, i32, i32) {
    %c0_i32 = arith.constant 0 : i32
    %c0_i32_0 = arith.constant 0 : i32
    %c0_i32_1 = arith.constant 0 : i32
    return %arg0, %c0_i32, %c0_i32_0 : i32, i32, i32
  }
}

</mosaic_0001>

<llo_original>
// kernel: tpu_custom_call.1
$region0: #{tpu_custom_call.1}
  #allocation0 [shape = 'u32[]', space=smem, size = 0x4, offset = 0x4, fixed_abs, tag = 'smem constant byte address 0x4 - core index']
  #allocation1 [shape = 'u32[144,128]{1,0:T(1,128)}', space=vmem, size = 0x12000, scoped, tag = 'internal scratch']
  %s0 = inlined_call_operand.hbm [shape: f32[8,256], index: 0, kind: input, shape index: {}]
  %s1 = inlined_call_operand.vmem [shape: s32[1,256], index: 1, kind: input, shape index: {}]
  %s2 = inlined_call_operand.hbm [shape: f32[1,1,256], index: 2, kind: output, shape index: {}]
  %s3 = sld [smem:[#allocation0]]
  $region34: #{tpu_custom_call.1} parent=0
    _
  %s5 = ssub.s32 1, %s3
  %s6 = scalar_select 0, %s5, %s3
  $region1: #{tpu_custom_call.1} parent=0
    #allocation2 [shape = 'u8[8192]{0}', space=vmem, size = 0x2000, scoped, tag = 'input window, operand 0, single buffered']
    #allocation3 [shape = 's32[1]{0}', space=sflag, size = 0x4, scoped, tag = 'scoped memory for tpu_custom_call.1']
    #allocation4 [shape = 's32[1]{0}', space=sflag, size = 0x4, scoped, tag = 'scoped memory for tpu_custom_call.1']
    #allocation5 [shape = 'u8[1024]{0}', space=vmem, size = 0x400, scoped, tag = 'output window, operand 0, single buffered']
    %7 = vsyncpa [#allocation3], 0
    %8 = vsyncpa [#allocation4], 0
    // Predicated region
    $region2: #{tpu_custom_call.1} parent=1 // pred_check
      _
    $region3: #{tpu_custom_call.1} parent=1 // pred_check_branch
      %10 = sbr.rel (0) target = $region5
    $region4: #{tpu_custom_call.1} parent=1 // pred_region
      %s11 = sadd.s32 0, 0
      %p12 = scmp.lt.s32.totalorder %s11, 0
      %s13 = scalar_select %p12, %s11, 0
      %s15 = ssub.s32 256, 256
      %16 = vsyncadd [#allocation3], %s15
      %s17 = smul.addr %s13, 2
      %s18 = smul.addr %s17, 128
      %s19 = scalar_lea.hbm %s0, %s18
      %s21 = sshll.u32 [#allocation2], 4
      %s22 = int_to_ptr.vmem [resolvable:$true] %s21
      %24 = dma.hbm_to_vmem [thread:$0]  %s19, 256, %s22, [#allocation3]
    $region5: #{tpu_custom_call.1} parent=1 // pred_fallthru
      _
    // Predicated region
    $region6: #{tpu_custom_call.1} parent=1 // pred_check
      _
    $region7: #{tpu_custom_call.1} parent=1 // pred_check_branch
      %26 = sbr.rel (0) target = $region9
    $region8: #{tpu_custom_call.1} parent=1 // pred_region
      _
    $region9: #{tpu_custom_call.1} parent=1 // pred_fallthru
      _
    // Predicated region
    $region10: #{tpu_custom_call.1} parent=1 // pred_check
      _
    $region11: #{tpu_custom_call.1} parent=1 // pred_check_branch
      %28 = sbr.rel (0) target = $region13
    $region12: #{tpu_custom_call.1} parent=1 // pred_region
      %29 = dma.done [#allocation3], 256
    $region13: #{tpu_custom_call.1} parent=1 // pred_fallthru
      _
    %s30 = sadd.s32 0, 0
    %p31 = scmp.lt.s32.totalorder %s30, 0
    %s32 = scalar_select %p31, %s30, 0
    %p33 = scmp.eq.s32.totalorder 0, 0
    // Predicated region
    $region14: #{tpu_custom_call.1} parent=1 // pred_check
      %p34 = pneg %p33
    $region15: #{tpu_custom_call.1} parent=1 // pred_check_branch
      %36 = sbr.rel (%p34) target = $region17
    $region16: #{tpu_custom_call.1} parent=1 // pred_region
      %v37 = vlaneseq
      %vm38 = vcmp.ge.s32.totalorder %v37, 0
      %vm39 = vcmp.lt.s32.totalorder %v37, 256
      %vm40 = vmand %vm38, %vm39
      %41 = vst.msk [vmem:[#allocation5] sm:$0x3] %vm40, 0.0
    $region17: #{tpu_custom_call.1} parent=1 // pred_fallthru
      _
    %v42 = vld [vmem:[%s1] sm:$0x3]
    %v43 = vlaneseq
    %v44 = vshrl.u32 %v43, 7
    %v45 = vsub.s32 0, %v44
    %v46 = vrot.slane %v42, %v45
    %v47 = vlaneseq
    %v48 = vshrl.u32 %v47, 7
    %v49 = vsub.s32 1, %v48
    %v50 = vrot.slane %v42, %v49
    %51 = vrot.lane.b32.xlu0 %v46, 112
    %v52 = vpop.permute.xlu0 %51
    %53 = vrot.lane.b32.xlu0 %v50, 112
    %v54 = vpop.permute.xlu0 %53
    %v55 = vlaneseq
    %v56 = vand.u32 %v55, 127
    %vm57 = vcmp.lt.s32.totalorder %v56, 112
    %v58 = vsel %vm57, %v52, %v54
    %v59 = vsel %vm57, %v54, %v52
    %60 = vrot.lane.b32.xlu0 %v46, 127
    %v61 = vpop.permute.xlu0 %60
    %62 = vrot.lane.b32.xlu0 %v50, 127
    %v63 = vpop.permute.xlu0 %62
    %vm64 = vcmp.lt.s32.totalorder %v56, 127
    %v65 = vsel %vm64, %v61, %v63
    %v66 = vsel %vm64, %v63, %v61
    %v67 = vsub.s32 %v58, %v46
    %v68 = vsub.s32 %v59, %v50
    %vm69 = vcmp.lt.s32.totalorder %v67, 0
    %v70 = vsub.s32 0, %v67
    %v71 = vsel %vm69, %v70, %v67
    %vm72 = vcmp.lt.s32.totalorder %v68, 0
    %v73 = vsub.s32 0, %v68
    %v74 = vsel %vm72, %v73, %v68
    %vm75 = vcmp.eq.s32.totalorder %v71, 1
    %vm76 = vcmp.eq.s32.totalorder %v74, 1
    %v77 = vsel %vm75, 1, 0
    %v78 = vsel %vm76, 1, 0
    %v79 = vcvt.s32.f32 %v77
    %v80 = vcvt.s32.f32 %v78
    %v81 = vmul.f32 %v79, 0.0010416667
    %v82 = vmul.f32 %v80, 0.0010416667
    %vm83 = vcmp.eq.s32.totalorder %v65, %v46
    %vm84 = vcmp.eq.s32.totalorder %v66, %v50
    %v85 = vsel %vm83, 1, 0
    %v86 = vsel %vm84, 1, 0
    %v87 = vcvt.s32.f32 %v85
    %v88 = vcvt.s32.f32 %v86
    %v89 = vmul.f32 %v87, 0.0010416667
    %v90 = vmul.f32 %v88, 0.0010416667
    %v91 = vld [vmem:[#allocation2] sm:$0xff]
    %v92 = vld [vmem:[#allocation2 + $0x8] sm:$0xff]
    %s93 = sadd.s32 0, 0
    %s94 = smul.u32 %s93, 8
    %s95 = ssub.s32 8, %s94
    %p96 = scmp.ge.s32.totalorder %s95, 8
    // Predicated region
    $region18: #{tpu_custom_call.1} parent=1 // pred_check
      %p97 = pneg %p96
    $region19: #{tpu_custom_call.1} parent=1 // pred_check_branch
      %99 = sbr.rel (%p97) target = $region21
    $region20: #{tpu_custom_call.1} parent=1 // pred_region
      %v100 = vld [vmem:[#allocation5] sm:$0x3]
      %101 = vrot.lane.b32.xlu0 %v91, 112
      %v102 = vpop.permute.xlu0 %101
      %103 = vrot.lane.b32.xlu0 %v92, 112
      %v104 = vpop.permute.xlu0 %103
      %v105 = vsel %vm57, %v102, %v104
      %v106 = vsel %vm57, %v104, %v102
      %v107 = vsub.f32 %v105, %v91
      %v108 = vsub.f32 %v106, %v92
      %109 = vrot.lane.b32.xlu0 %v91, 127
      %v110 = vpop.permute.xlu0 %109
      %111 = vrot.lane.b32.xlu0 %v92, 127
      %v112 = vpop.permute.xlu0 %111
      %v113 = vsel %vm64, %v110, %v112
      %v114 = vsel %vm64, %v112, %v110
      %v115 = vsub.f32 %v113, %v91
      %v116 = vsub.f32 %v114, %v92
      %v117 = vmul.f32 %v107, %v107
      %v118 = vmul.f32 %v108, %v108
      %v119 = vrot.slane %v117, 4
      %v120 = vadd.f32 %v117, %v119
      %v121 = vrot.slane %v120, 2
      %v122 = vadd.f32 %v120, %v121
      %v123 = vrot.slane %v122, 1
      %v124 = vadd.f32 %v122, %v123
      %v125 = vrot.slane %v118, 4
      %v126 = vadd.f32 %v118, %v125
      %v127 = vrot.slane %v126, 2
      %v128 = vadd.f32 %v126, %v127
      %v129 = vrot.slane %v128, 1
      %v130 = vadd.f32 %v128, %v129
      %v131 = vmul.f32 %v115, %v115
      %v132 = vmul.f32 %v116, %v116
      %v133 = vrot.slane %v131, 4
      %v134 = vadd.f32 %v131, %v133
      %v135 = vrot.slane %v134, 2
      %v136 = vadd.f32 %v134, %v135
      %v137 = vrot.slane %v136, 1
      %v138 = vadd.f32 %v136, %v137
      %v139 = vrot.slane %v132, 4
      %v140 = vadd.f32 %v132, %v139
      %v141 = vrot.slane %v140, 2
      %v142 = vadd.f32 %v140, %v141
      %v143 = vrot.slane %v142, 1
      %v144 = vadd.f32 %v142, %v143
      %v145 = vmul.f32 %v124, %v81
      %v146 = vmul.f32 %v130, %v82
      %v147 = vmul.f32 %v138, %v89
      %v148 = vmul.f32 %v144, %v90
      %v149 = vadd.f32 %v145, %v147
      %v150 = vadd.f32 %v146, %v148
      %v153 = vcombine.low %v149, %v150
      %v155 = vunpack.c.l.s4 1966171168
      %v156 = vunpack.c.0.s8 %v155
      %v157 = vlaneseq
      %v158 = vshrl.u32 %v157, 7
      %v159 = vsub.s32 %v156, %v158
      %v160 = vrot.slane %v153, %v159
      %v162 = vunpack.c.l.s4 1966171168
      %v163 = vunpack.c.0.s8 %v162
      %v164 = vlaneseq
      %v165 = vshrl.u32 %v164, 7
      %v166 = vsub.s32 %v163, %v165
      %v167 = vrot.slane %v160, %v166
      %v169 = vadd.f32 %v100, %v167
      %v170 = vlaneseq
      %vm171 = vcmp.ge.s32.totalorder %v170, 0
      %vm172 = vcmp.lt.s32.totalorder %v170, 256
      %vm173 = vmand %vm171, %vm172
      %174 = vst.msk [vmem:[#allocation5] sm:$0x3] %vm173, %v169
    $region21: #{tpu_custom_call.1} parent=1 // pred_fallthru
      _
    %p175 = scmp.lt.s32.totalorder %s95, 8
    // Predicated region
    $region22: #{tpu_custom_call.1} parent=1 // pred_check
      %p176 = pneg %p175
    $region23: #{tpu_custom_call.1} parent=1 // pred_check_branch
      %178 = sbr.rel (%p176) target = $region25
    $region24: #{tpu_custom_call.1} parent=1 // pred_region
      %v179 = vlaneseq
      %v180 = vshrl.u32 %v179, 7
      %v181 = vstv %s95
      %vm182 = vcmp.lt.s32.totalorder %v180, %v181
      %v183 = vld [vmem:[#allocation5] sm:$0x3]
      %v184 = vsel %vm182, 1, 0
      %vm185 = vcmp.eq.s32.totalorder %v184, 1
      %v186 = vsel %vm185, %v91, 0.0
      %v187 = vsel %vm185, %v92, 0.0
      %188 = vrot.lane.b32.xlu0 %v186, 112
      %v189 = vpop.permute.xlu0 %188
      %190 = vrot.lane.b32.xlu0 %v187, 112
      %v191 = vpop.permute.xlu0 %190
      %v192 = vsel %vm57, %v189, %v191
      %v193 = vsel %vm57, %v191, %v189
      %v194 = vsub.f32 %v192, %v186
      %v195 = vsub.f32 %v193, %v187
      %196 = vrot.lane.b32.xlu0 %v186, 127
      %v197 = vpop.permute.xlu0 %196
      %198 = vrot.lane.b32.xlu0 %v187, 127
      %v199 = vpop.permute.xlu0 %198
      %v200 = vsel %vm64, %v197, %v199
      %v201 = vsel %vm64, %v199, %v197
      %v202 = vsub.f32 %v200, %v186
      %v203 = vsub.f32 %v201, %v187
      %v204 = vmul.f32 %v194, %v194
      %v205 = vmul.f32 %v195, %v195
      %v206 = vrot.slane %v204, 4
      %v207 = vadd.f32 %v204, %v206
      %v208 = vrot.slane %v207, 2
      %v209 = vadd.f32 %v207, %v208
      %v210 = vrot.slane %v209, 1
      %v211 = vadd.f32 %v209, %v210
      %v212 = vrot.slane %v205, 4
      %v213 = vadd.f32 %v205, %v212
      %v214 = vrot.slane %v213, 2
      %v215 = vadd.f32 %v213, %v214
      %v216 = vrot.slane %v215, 1
      %v217 = vadd.f32 %v215, %v216
      %v218 = vmul.f32 %v202, %v202
      %v219 = vmul.f32 %v203, %v203
      %v220 = vrot.slane %v218, 4
      %v221 = vadd.f32 %v218, %v220
      %v222 = vrot.slane %v221, 2
      %v223 = vadd.f32 %v221, %v222
      %v224 = vrot.slane %v223, 1
      %v225 = vadd.f32 %v223, %v224
      %v226 = vrot.slane %v219, 4
      %v227 = vadd.f32 %v219, %v226
      %v228 = vrot.slane %v227, 2
      %v229 = vadd.f32 %v227, %v228
      %v230 = vrot.slane %v229, 1
      %v231 = vadd.f32 %v229, %v230
      %v232 = vmul.f32 %v211, %v81
      %v233 = vmul.f32 %v217, %v82
      %v234 = vmul.f32 %v225, %v89
      %v235 = vmul.f32 %v231, %v90
      %v236 = vadd.f32 %v232, %v234
      %v237 = vadd.f32 %v233, %v235
      %v240 = vcombine.low %v236, %v237
      %v242 = vunpack.c.l.s4 1966171168
      %v243 = vunpack.c.0.s8 %v242
      %v244 = vlaneseq
      %v245 = vshrl.u32 %v244, 7
      %v246 = vsub.s32 %v243, %v245
      %v247 = vrot.slane %v240, %v246
      %v249 = vunpack.c.l.s4 1966171168
      %v250 = vunpack.c.0.s8 %v249
      %v251 = vlaneseq
      %v252 = vshrl.u32 %v251, 7
      %v253 = vsub.s32 %v250, %v252
      %v254 = vrot.slane %v247, %v253
      %v256 = vadd.f32 %v183, %v254
      %v257 = vlaneseq
      %vm258 = vcmp.ge.s32.totalorder %v257, 0
      %vm259 = vcmp.lt.s32.totalorder %v257, 256
      %vm260 = vmand %vm258, %vm259
      %261 = vst.msk [vmem:[#allocation5] sm:$0x3] %vm260, %v256
    $region25: #{tpu_custom_call.1} parent=1 // pred_fallthru
      _
    // Predicated region
    $region26: #{tpu_custom_call.1} parent=1 // pred_check
      _
    $region27: #{tpu_custom_call.1} parent=1 // pred_check_branch
      %263 = sbr.rel (0) target = $region29
    $region28: #{tpu_custom_call.1} parent=1 // pred_region
      %s265 = ssub.s32 32, 32
      %266 = vsyncadd [#allocation4], %s265
      %s268 = sshll.u32 [#allocation5], 4
      %s269 = int_to_ptr.vmem [resolvable:$true] %s268
      %271 = dma.vmem_to_hbm [thread:$0]  %s269, 32, %s2, [#allocation4]
    $region29: #{tpu_custom_call.1} parent=1 // pred_fallthru
      _
    // Predicated region
    $region30: #{tpu_custom_call.1} parent=1 // pred_check
      _
    $region31: #{tpu_custom_call.1} parent=1 // pred_check_branch
      %273 = sbr.rel (0) target = $region33
    $region32: #{tpu_custom_call.1} parent=1 // pred_region
      %274 = dma.done [#allocation4], 32
    $region33: #{tpu_custom_call.1} parent=1 // pred_fallthru
      _
    %275 = vsyncpa [#allocation3], 1
    %276 = vsyncpa [#allocation4], 1

</llo_original>
